<compile_context>
chip_gen: v5e
topology: v5e:2x2
jax: 0.10.0
libtpu: 0.0.40
codegen_flags: <defaults>
</compile_context>

<pallas_src>
import numpy as np
import jax
import jax.numpy as jnp
from jax.experimental import pallas as pl
from jax.experimental.pallas import tpu as pltpu


_TARGET_BLOCK_BYTES = 8 * 1024 * 1024     # ~8 MiB per block
_VMEM_LIMIT_BYTES = 48 * 1024 * 1024      # 2 bufs x 2 (in/out) x 8 MiB + headroom
_MIN_SPLIT_BYTES = 8 * 1024 * 1024        # only force >=2 grid steps above this
_LANE_CANDIDATES = (4096, 2048, 1024, 512, 256, 128)


def _cdiv(a, b):
    return -(-a // b)


def _round_up(a, b):
    return _cdiv(a, b) * b


def _copy_kernel(x_ref, o_ref):
    # Identity copy of one lane-dense VMEM block (pure vld/vst; DMA-bound).
    o_ref[...] = x_ref[...]


def _dense_layout(total, itemsize):
    """Pick (lane, m, tile_m) for the dense (m, lane) copy slab (total % 128 == 0)."""
    granule = max(8, 32 // itemsize)          # sublane granule for this dtype

    lane = 128
    for cand in _LANE_CANDIDATES:             # widest lane leaving >= granule rows
        if total % cand == 0 and total // cand >= granule:
            lane = cand
            break
    else:                                      # tiny input: widest exact divisor
        for cand in _LANE_CANDIDATES:
            if total % cand == 0:
                lane = cand
                break

    m = total // lane
    if m <= granule:
        tile_m = m                             # single thin block == full extent
    else:
        tile_m = max(granule,
                     (_TARGET_BLOCK_BYTES // (lane * itemsize)) // granule * granule)
        tile_m = min(tile_m, _round_up(m, granule))
        if total * itemsize >= _MIN_SPLIT_BYTES:
            # Prefer an even number of grid steps so both v7x TensorCores get
            # work; the extra step is noise at >= 8 MiB on single-TC chips.
            steps = _cdiv(m, tile_m)
            if steps % 2 == 1:
                tile_m = max(granule, _round_up(_cdiv(m, steps + 1), granule))
    return lane, m, tile_m


def _materialize_dense(flat, total, itemsize):
    """total % 128 == 0: copy as a lane-dense (m, lane) slab, 1-D grid."""
    lane, m, tile_m = _dense_layout(total, itemsize)
    x2 = flat.reshape(m, lane)                 # metadata-only reshape
    grid = (_cdiv(m, tile_m),)
    out2d = pl.pallas_call(
        _copy_kernel,
        out_shape=jax.ShapeDtypeStruct((m, lane), flat.dtype),
        grid_spec=pltpu.PrefetchScalarGridSpec(
            num_scalar_prefetch=0,
            grid=grid,
            in_specs=[pl.BlockSpec((tile_m, lane), lambda i: (i, 0))],
            out_specs=pl.BlockSpec((tile_m, lane), lambda i: (i, 0)),
        ),
        compiler_params=pltpu.CompilerParams(
            dimension_semantics=("parallel",),
            vmem_limit_bytes=_VMEM_LIMIT_BYTES,
        ),
    )(x2)
    return out2d.reshape(total)


def _materialize_natural(x2):
    """Fallback for non-128-divisible sizes: tile the (R, C) array directly.

    cdiv grid + partial edge blocks replace the old jnp.pad / [:total] slice
    passes — exactly one HBM read+write instead of three.
    """
    R, C = x2.shape
    itemsize = np.dtype(x2.dtype).itemsize
    granule = max(8, 32 // itemsize)

    if R <= granule or R * 128 * itemsize <= _TARGET_BLOCK_BYTES:
        tile_r = R
    else:
        tile_r = max(granule,
                     (_TARGET_BLOCK_BYTES // (128 * itemsize)) // granule * granule)
        tile_r = min(tile_r, _round_up(R, granule))
    tile_c = min(_round_up(C, 128),
                 max(128, (_TARGET_BLOCK_BYTES // (tile_r * itemsize)) // 128 * 128))

    grid = (_cdiv(R, tile_r), _cdiv(C, tile_c))
    return pl.pallas_call(
        _copy_kernel,
        out_shape=jax.ShapeDtypeStruct((R, C), x2.dtype),
        grid_spec=pltpu.PrefetchScalarGridSpec(
            num_scalar_prefetch=0,
            grid=grid,
            in_specs=[pl.BlockSpec((tile_r, tile_c), lambda i, j: (i, j))],
            out_specs=pl.BlockSpec((tile_r, tile_c), lambda i, j: (i, j)),
        ),
        compiler_params=pltpu.CompilerParams(
            dimension_semantics=("parallel", "parallel"),
            vmem_limit_bytes=_VMEM_LIMIT_BYTES,
        ),
    )(x2)


def flatten(x, *, materialize=False):
    """Pallas equivalent of torch Flatten: x.view(x.size(0), -1).

    Default (materialize=False) matches torch .view exactly: a metadata-only
    reshape with zero HBM traffic.  Pass materialize=True only when a
    distinct, freshly materialized buffer is required; that path runs a
    single lane-dense Pallas copy kernel.
    """
    B = x.shape[0]
    F = int(np.prod(x.shape[1:])) if x.ndim > 1 else 1
    out_view = x.reshape(B, F)                 # metadata-only, like torch .view

    total = B * F
    if not materialize or total == 0:
        return out_view                        # fast path: no kernel, no copy

    itemsize = np.dtype(x.dtype).itemsize
    if total % 128 == 0:
        out_flat = _materialize_dense(out_view.reshape(total), total, itemsize)
        return out_flat.reshape(B, F)
    return _materialize_natural(out_view)


if __name__ == "__main__":
    key = jax.random.PRNGKey(0)

    # 1) Default path: pure view semantics (exactly what torch Flatten does).
    B, C, H, W = 2, 4, 16, 16
    x = jax.random.normal(key, (B, C, H, W), dtype=jnp.float32)
    y_view = jax.block_until_ready(flatten(x))
    ref = np.asarray(x).reshape(B, -1)
    np.testing.assert_allclose(np.asarray(y_view), ref, rtol=0, atol=0)
    assert y_view.shape == (B, C * H * W) and y_view.dtype == x.dtype

    # 2) Materialized copy, dense lane-aligned path (F multiple of 128).
    y_copy = jax.block_until_ready(flatten(x, materialize=True))
    np.testing.assert_allclose(np.asarray(y_copy), ref, rtol=0, atol=0)
    assert y_copy.shape == (B, C * H * W) and y_copy.dtype == x.dtype

    # 3) Materialized copy, non-128-divisible feature size (masked edge blocks).
    x_odd = jax.random.normal(jax.random.PRNGKey(1), (2, 3, 5, 7), dtype=jnp.float32)
    y_odd = jax.block_until_ready(flatten(x_odd, materialize=True))
    ref_odd = np.asarray(x_odd).reshape(2, -1)
    np.testing.assert_allclose(np.asarray(y_odd), ref_odd, rtol=0, atol=0)
    assert y_odd.shape == (2, 3 * 5 * 7)

    # 4) Materialized copy with a sub-32-bit dtype (exercises the bf16 granule).
    x_bf16 = jax.random.normal(jax.random.PRNGKey(2), (2, 8, 16, 16)).astype(jnp.bfloat16)
    y_bf16 = jax.block_until_ready(flatten(x_bf16, materialize=True))
    ref_bf16 = np.asarray(x_bf16).reshape(2, -1)
    np.testing.assert_array_equal(np.asarray(y_bf16), ref_bf16)
    assert y_bf16.dtype == jnp.bfloat16

    print("KERNEL_OK")
</pallas_src>

<mosaic_0001>
module attributes {stable_mosaic.version = 11 : i64} {
  func.func @_copy_kernel(%arg0: i32, %arg1: memref<8x256xf32, #tpu.memory_space<vmem>>, %arg2: memref<8x256xf32, #tpu.memory_space<vmem>>) attributes {dimension_semantics = [#tpu.dimension_semantics<parallel>], iteration_bounds = array<i64: 1>, scalar_prefetch = 0 : i64, scratch_operands = 0 : i64, tpu.core_type = #tpu.core_type<tc>, window_params = [{transform_indices = @transform_0, window_bounds = array<i64: 8, 256>}, {transform_indices = @transform_1, window_bounds = array<i64: 8, 256>}]} {
    %c0 = arith.constant 0 : index
    %c0_0 = arith.constant 0 : index
    %0 = vector.load %arg1[%c0, %c0_0] : memref<8x256xf32, #tpu.memory_space<vmem>>, vector<8x256xf32>
    %c0_1 = arith.constant 0 : index
    %c0_2 = arith.constant 0 : index
    %1 = vector.load %arg2[%c0_1, %c0_2] : memref<8x256xf32, #tpu.memory_space<vmem>>, vector<8x256xf32>
    tpu.vector_store %arg2[%c0_1, %c0_2], %0 {strides = array<i32>} : memref<8x256xf32, #tpu.memory_space<vmem>>, vector<8x256xf32>,
    return
  }
  func.func @transform_0(%arg0: i32) -> (i32, i32) {
    %c0_i32 = arith.constant 0 : i32
    %c0_i32_0 = arith.constant 0 : i32
    return %arg0, %c0_i32 : i32, i32
  }
  func.func @transform_1(%arg0: i32) -> (i32, i32) {
    %c0_i32 = arith.constant 0 : i32
    %c0_i32_0 = arith.constant 0 : i32
    return %arg0, %c0_i32 : i32, i32
  }
}

</mosaic_0001>

<llo_original>
// kernel: tpu_custom_call.1
$region0: #{tpu_custom_call.1}
  #allocation0 [shape = 'u32[]', space=smem, size = 0x4, offset = 0x4, fixed_abs, tag = 'smem constant byte address 0x4 - core index']
  #allocation1 [shape = 'u32[72,128]{1,0:T(1,128)}', space=vmem, size = 0x9000, scoped, tag = 'internal scratch']
  %s0 = inlined_call_operand.hbm [shape: f32[8,256], index: 0, kind: input, shape index: {}]
  %s1 = inlined_call_operand.hbm [shape: f32[8,256], index: 1, kind: output, shape index: {}]
  %s2 = sld [smem:[#allocation0]]
  $region18: #{tpu_custom_call.1} parent=0
    _
  %s4 = ssub.s32 1, %s2
  %s5 = scalar_select 0, %s4, %s2
  $region1: #{tpu_custom_call.1} parent=0
    #allocation2 [shape = 'u8[8192]{0}', space=vmem, size = 0x2000, scoped, tag = 'input window, operand 0, single buffered']
    #allocation3 [shape = 's32[1]{0}', space=sflag, size = 0x4, scoped, tag = 'scoped memory for tpu_custom_call.1']
    #allocation4 [shape = 's32[1]{0}', space=sflag, size = 0x4, scoped, tag = 'scoped memory for tpu_custom_call.1']
    #allocation5 [shape = 'u8[8192]{0}', space=vmem, size = 0x2000, scoped, tag = 'output window, operand 0, single buffered']
    %6 = vsyncpa [#allocation3], 0
    %7 = vsyncpa [#allocation4], 0
    // Predicated region
    $region2: #{tpu_custom_call.1} parent=1 // pred_check
      _
    $region3: #{tpu_custom_call.1} parent=1 // pred_check_branch
      %9 = sbr.rel (0) target = $region5
    $region4: #{tpu_custom_call.1} parent=1 // pred_region
      %11 = vsyncadd [#allocation3], 0
      %s13 = sshll.u32 %s0, 4
      %s14 = int_to_ptr.hbm [resolvable:$true] %s13
      %s15 = sshll.u32 [#allocation2], 4
      %s16 = int_to_ptr.vmem [resolvable:$true] %s15
      %18 = dma.hbm_to_vmem [thread:$0]  %s14, 256, %s16, [#allocation3]
    $region5: #{tpu_custom_call.1} parent=1 // pred_fallthru
      _
    // Predicated region
    $region6: #{tpu_custom_call.1} parent=1 // pred_check
      _
    $region7: #{tpu_custom_call.1} parent=1 // pred_check_branch
      %20 = sbr.rel (0) target = $region9
    $region8: #{tpu_custom_call.1} parent=1 // pred_region
      %22 = dma.done [#allocation3], 256
    $region9: #{tpu_custom_call.1} parent=1 // pred_fallthru
      _
    %v23 = vld [vmem:[#allocation2] sm:$0xff]
    %v24 = vld [vmem:[#allocation2 + $0x8] sm:$0xff]
    %25 = vst [vmem:[#allocation5] sm:$0xff] %v23
    %26 = vst [vmem:[#allocation5 + $0x8] sm:$0xff] %v24
    // Predicated region
    $region10: #{tpu_custom_call.1} parent=1 // pred_check
      _
    $region11: #{tpu_custom_call.1} parent=1 // pred_check_branch
      %28 = sbr.rel (0) target = $region13
    $region12: #{tpu_custom_call.1} parent=1 // pred_region
      %30 = vsyncadd [#allocation4], 0
      %s32 = sshll.u32 [#allocation5], 4
      %s33 = int_to_ptr.vmem [resolvable:$true] %s32
      %s34 = sshll.u32 %s1, 4
      %s35 = int_to_ptr.hbm [resolvable:$true] %s34
      %37 = dma.vmem_to_hbm [thread:$0]  %s33, 256, %s35, [#allocation4]
    $region13: #{tpu_custom_call.1} parent=1 // pred_fallthru
      _
    // Predicated region
    $region14: #{tpu_custom_call.1} parent=1 // pred_check
      _
    $region15: #{tpu_custom_call.1} parent=1 // pred_check_branch
      %39 = sbr.rel (0) target = $region17
    $region16: #{tpu_custom_call.1} parent=1 // pred_region
      %41 = dma.done [#allocation4], 256
    $region17: #{tpu_custom_call.1} parent=1 // pred_fallthru
      _
    %42 = vsyncpa [#allocation3], 1
    %43 = vsyncpa [#allocation4], 1

</llo_original>
